<compile_context>
chip_gen: v6e
topology: v6e:2x2x1
jax: 0.10.0
libtpu: 0.0.40
codegen_flags: <defaults>
</compile_context>

<pallas_src>
import jax
import jax.numpy as jnp
from jax.experimental import pallas as pl
from jax.experimental.pallas import tpu as pltpu


def _round_up(v: int, m: int) -> int:
    return (v + m - 1) // m * m


# -----------------------------------------------------------------------------
# Kernels
# -----------------------------------------------------------------------------
def _make_fullf_kernel(eps: float, affine: bool, n_feat: int):
    """Whole (padded) feature axis in one lane-dense block per sample row."""
    inv_n = 1.0 / n_feat
    # torch .std() is unbiased (ddof = 1); n_feat == 1 gives NaN, same as torch.
    inv_nm1 = 1.0 / (n_feat - 1) if n_feat > 1 else float("nan")

    def _row_stats(x):
        # Fused single-sweep stats: sum and sum-of-squares together.
        s = jnp.sum(x, axis=-1, keepdims=True)            # (bt, 1)
        ss = jnp.sum(x * x, axis=-1, keepdims=True)       # (bt, 1)
        mean = s * inv_n
        var = (ss - n_feat * mean * mean) * inv_nm1
        var = jnp.maximum(var, 0.0)                       # guard cancellation
        inv = pl.reciprocal(jnp.sqrt(var) + eps, approx=False)
        return mean, inv

    def kernel_affine(x_ref, gamma_ref, beta_ref, o_ref):
        x = x_ref[...].astype(jnp.float32)
        mean, inv = _row_stats(x)
        y = (x - mean) * inv * gamma_ref[...] + beta_ref[...]   # (1,F) bcast
        o_ref[...] = y.astype(o_ref.dtype)

    def kernel_plain(x_ref, o_ref):
        x = x_ref[...].astype(jnp.float32)
        mean, inv = _row_stats(x)
        o_ref[...] = ((x - mean) * inv).astype(o_ref.dtype)

    return kernel_affine if affine else kernel_plain


def _make_stats_kernel(eps: float, n_feat: int):
    """F-tiled pass 1: accumulate per-row sum / sum-of-squares across F tiles."""
    inv_n = 1.0 / n_feat
    inv_nm1 = 1.0 / (n_feat - 1) if n_feat > 1 else float("nan")

    def kernel(x_ref, mean_ref, inv_ref, s_acc, ss_acc):
        f = pl.program_id(1)

        @pl.when(f == 0)
        def _():
            s_acc[...] = jnp.zeros_like(s_acc)
            ss_acc[...] = jnp.zeros_like(ss_acc)

        x = x_ref[...].astype(jnp.float32)
        s_acc[...] += jnp.sum(x, axis=-1, keepdims=True)
        ss_acc[...] += jnp.sum(x * x, axis=-1, keepdims=True)

        @pl.when(f == pl.num_programs(1) - 1)
        def _():
            mean = s_acc[...] * inv_n
            var = (ss_acc[...] - n_feat * mean * mean) * inv_nm1
            var = jnp.maximum(var, 0.0)
            mean_ref[...] = mean
            inv_ref[...] = pl.reciprocal(jnp.sqrt(var) + eps, approx=False)

    return kernel


def _norm_affine_kernel(x_ref, mean_ref, inv_ref, gamma_ref, beta_ref, o_ref):
    x = x_ref[...].astype(jnp.float32)
    y = (x - mean_ref[...]) * inv_ref[...] * gamma_ref[...] + beta_ref[...]
    o_ref[...] = y.astype(o_ref.dtype)


def _norm_plain_kernel(x_ref, mean_ref, inv_ref, o_ref):
    x = x_ref[...].astype(jnp.float32)
    o_ref[...] = ((x - mean_ref[...]) * inv_ref[...]).astype(o_ref.dtype)


# -----------------------------------------------------------------------------
# Wrapper
# -----------------------------------------------------------------------------
def layer_norm(x, gamma=None, beta=None, eps=1e-5, affine=True,
               block_budget_bytes=24 << 20, max_feature_tile=8192):
    """x: (B, C, *spatial). gamma/beta: (C,), used iff affine."""
    B = x.shape[0]
    C = x.shape[1] if x.ndim >= 2 else 1
    F = 1
    for d in x.shape[1:]:
        F *= d
    spatial = F // C
    itemsize = jnp.dtype(x.dtype).itemsize

    # Lane-dense layout: one full sample per row.
    x2 = x.reshape(B, F)

    # ---- feature-axis layout -------------------------------------------------
    # Pad F to a multiple of 128 so loads/stores are unmasked lane-dense vst;
    # zero padding contributes nothing to sum / sum-of-squares, so the TRUE F
    # is still used in the statistics.
    f128 = _round_up(F, 128)
    # A (8, f128) in+out block pair, double-buffered, must fit the budget to
    # use the single-feature-block path; otherwise tile the feature axis.
    single_f_block = 4 * 8 * f128 * itemsize <= block_budget_bytes
    if single_f_block:
        tf = f128
    else:
        tf = max(128, (min(max_feature_tile, f128) // 128) * 128)
    Fp = _round_up(F, tf)
    if Fp != F:
        x2 = jnp.pad(x2, ((0, 0), (0, Fp - F)))

    gamma_flat = beta_flat = None
    if affine:
        # Pre-broadcast per-channel gamma/beta to a lane-aligned (1, Fp) row.
        gamma_flat = jnp.broadcast_to(
            gamma.astype(jnp.float32).reshape(C, 1), (C, spatial)).reshape(1, F)
        beta_flat = jnp.broadcast_to(
            beta.astype(jnp.float32).reshape(C, 1), (C, spatial)).reshape(1, F)
        if Fp != F:
            gamma_flat = jnp.pad(gamma_flat, ((0, 0), (0, Fp - F)))
            beta_flat = jnp.pad(beta_flat, ((0, 0), (0, Fp - F)))

    # ---- batch-axis tiling -----------------------------------------------------
    # Live VMEM for the pipelined x/out blocks ~= 2 buffers x (in + out)
    # = 4 * bt * tf * itemsize.  Grow bt to the VMEM budget (this kernel is
    # purely HBM-bandwidth-bound; tiny tiles pay ~0.35 us/step fixed cost),
    # but keep >= 2 grid steps when B allows so "parallel" can shard the batch
    # axis across v7x's two TensorCores.
    per_row_bytes = 4 * tf * itemsize
    max_bt = max(8, (block_budget_bytes // per_row_bytes) // 8 * 8)
    if B <= 8:
        bt = B                       # block dim == full array dim is always legal
    else:
        bt = min(max_bt, max(8, (((B + 1) // 2) // 8) * 8))
    grid_b = pl.cdiv(B, bt)          # padded rows: stats stay per-row, OOB stores masked

    live_bytes = (4 * bt * tf * itemsize                 # x in + out, double-buffered
                  + (4 * 2 * tf * 4 if affine else 0)    # gamma/beta blocks
                  + 4 * 2 * bt * 4)                      # per-row stats / scratch
    # Explicit scoped-VMEM limit: above v5e's 16 MiB default, comfortably under
    # v7x's 64 MiB per-TensorCore physical VMEM.
    vmem_limit = int(min(max(live_bytes + (8 << 20), 32 << 20), 48 << 20))

    if single_f_block:
        kernel = _make_fullf_kernel(eps, affine, F)
        in_specs = [pl.BlockSpec((bt, Fp), lambda b: (b, 0))]
        args = [x2]
        if affine:
            in_specs += [pl.BlockSpec((1, Fp), lambda b: (0, 0)),
                         pl.BlockSpec((1, Fp), lambda b: (0, 0))]
            args += [gamma_flat, beta_flat]

        cost = pl.CostEstimate(
            flops=7 * B * F,
            transcendentals=2 * B,
            bytes_accessed=2 * B * F * itemsize + (2 * F * 4 if affine else 0),
        )
        out = pl.pallas_call(
            kernel,
            out_shape=jax.ShapeDtypeStruct((B, Fp), x.dtype),
            grid_spec=pltpu.PrefetchScalarGridSpec(
                num_scalar_prefetch=0,
                grid=(grid_b,),
                in_specs=in_specs,
                out_specs=pl.BlockSpec((bt, Fp), lambda b: (b, 0)),
            ),
            compiler_params=pltpu.CompilerParams(
                dimension_semantics=("parallel",),
                vmem_limit_bytes=vmem_limit,
            ),
            cost_estimate=cost,
        )(*args)
    else:
        # ---- F-tiled two-pass path (very large feature counts) -------------
        nf = Fp // tf
        grid = (grid_b, nf)

        # Pass 1: per-row mean and 1/(std + eps) via sum / sum-of-squares
        # accumulators over the F tiles (F axis last, "arbitrary").
        mean, inv = pl.pallas_call(
            _make_stats_kernel(eps, F),
            out_shape=(jax.ShapeDtypeStruct((B, 1), jnp.float32),
                       jax.ShapeDtypeStruct((B, 1), jnp.float32)),
            grid_spec=pltpu.PrefetchScalarGridSpec(
                num_scalar_prefetch=0,
                grid=grid,
                in_specs=[pl.BlockSpec((bt, tf), lambda b, f: (b, f))],
                out_specs=(pl.BlockSpec((bt, 1), lambda b, f: (b, 0)),
                           pl.BlockSpec((bt, 1), lambda b, f: (b, 0))),
                scratch_shapes=[pltpu.VMEM((bt, 1), jnp.float32),
                                pltpu.VMEM((bt, 1), jnp.float32)],
            ),
            compiler_params=pltpu.CompilerParams(
                dimension_semantics=("parallel", "arbitrary"),
                vmem_limit_bytes=vmem_limit,
            ),
        )(x2)

        # Pass 2: normalize + affine over the same F tiles.
        in_specs = [pl.BlockSpec((bt, tf), lambda b, f: (b, f)),
                    pl.BlockSpec((bt, 1), lambda b, f: (b, 0)),
                    pl.BlockSpec((bt, 1), lambda b, f: (b, 0))]
        args = [x2, mean, inv]
        if affine:
            in_specs += [pl.BlockSpec((1, tf), lambda b, f: (0, f)),
                         pl.BlockSpec((1, tf), lambda b, f: (0, f))]
            args += [gamma_flat, beta_flat]
            norm_kernel = _norm_affine_kernel
        else:
            norm_kernel = _norm_plain_kernel

        out = pl.pallas_call(
            norm_kernel,
            out_shape=jax.ShapeDtypeStruct((B, Fp), x.dtype),
            grid_spec=pltpu.PrefetchScalarGridSpec(
                num_scalar_prefetch=0,
                grid=grid,
                in_specs=in_specs,
                out_specs=pl.BlockSpec((bt, tf), lambda b, f: (b, f)),
            ),
            compiler_params=pltpu.CompilerParams(
                dimension_semantics=("parallel", "parallel"),
                vmem_limit_bytes=vmem_limit,
            ),
        )(*args)

    if Fp != F:
        out = out[:, :F]
    return out.reshape(x.shape)


def layer_norm_ref(x, gamma, beta, eps=1e-5, affine=True):
    """Pure-JAX reference matching the PyTorch module semantics."""
    B = x.shape[0]
    flat = x.reshape(B, -1).astype(jnp.float32)
    mean = flat.mean(axis=1)
    n = flat.shape[1]
    std = jnp.sqrt(jnp.sum((flat - mean[:, None]) ** 2, axis=1) / (n - 1))
    shape = (B,) + (1,) * (x.ndim - 1)
    y = (x.astype(jnp.float32) - mean.reshape(shape)) / (std.reshape(shape) + eps)
    if affine:
        gshape = (1, -1) + (1,) * (x.ndim - 2)
        y = y * gamma.reshape(gshape) + beta.reshape(gshape)
    return y.astype(x.dtype)


if __name__ == "__main__":
    key = jax.random.PRNGKey(0)
    kx, kg, kx2, kg2, kx3, kg3 = jax.random.split(key, 6)

    # --- 1) Module-spec shape: (B, C, H, W) = (2, 4, 16, 16), F = 1024 -------
    B, C, H, W = 2, 4, 16, 16
    x = jax.random.normal(kx, (B, C, H, W), dtype=jnp.float32)
    gamma = jax.random.uniform(kg, (C,), dtype=jnp.float32)   # ~ Tensor(C).uniform_()
    beta = jnp.zeros((C,), dtype=jnp.float32)

    out = jax.block_until_ready(layer_norm(x, gamma, beta, eps=1e-5, affine=True))
    ref = layer_norm_ref(x, gamma, beta, eps=1e-5, affine=True)
    assert out.shape == x.shape
    assert jnp.allclose(out, ref, atol=2e-5, rtol=2e-5), "mismatch vs reference (affine)"

    out_na = jax.block_until_ready(layer_norm(x, eps=1e-5, affine=False))
    ref_na = layer_norm_ref(x, gamma, beta, eps=1e-5, affine=False)
    assert jnp.allclose(out_na, ref_na, atol=2e-5, rtol=2e-5), "mismatch (no affine)"

    # --- 2) F not a multiple of 128 -> zero-padded lane-dense path -----------
    x_b = jax.random.normal(kx2, (3, 5, 7, 9), dtype=jnp.float32)   # F = 315
    g_b = jax.random.uniform(kg2, (5,), dtype=jnp.float32)
    b_b = jnp.zeros((5,), dtype=jnp.float32)
    out_b = jax.block_until_ready(layer_norm(x_b, g_b, b_b))
    ref_b = layer_norm_ref(x_b, g_b, b_b)
    assert jnp.allclose(out_b, ref_b, atol=2e-5, rtol=2e-5), "mismatch (padded F)"

    # --- 3) Force the F-tiled two-pass path + cdiv batch grid ----------------
    x_c = jax.random.normal(kx3, (10, 4, 16, 16), dtype=jnp.float32)
    g_c = jax.random.uniform(kg3, (4,), dtype=jnp.float32)
    b_c = jnp.zeros((4,), dtype=jnp.float32)
    out_c = jax.block_until_ready(
        layer_norm(x_c, g_c, b_c, block_budget_bytes=64 << 10, max_feature_tile=256))
    ref_c = layer_norm_ref(x_c, g_c, b_c)
    assert jnp.allclose(out_c, ref_c, atol=2e-5, rtol=2e-5), "mismatch (F-tiled)"

    print("KERNEL_OK")
</pallas_src>

<mosaic_0001>
module attributes {stable_mosaic.version = 11 : i64} {
  func.func @kernel_affine(%arg0: i32, %arg1: memref<2x1024xf32, #tpu.memory_space<vmem>>, %arg2: memref<1x1024xf32, #tpu.memory_space<vmem>>, %arg3: memref<1x1024xf32, #tpu.memory_space<vmem>>, %arg4: memref<2x1024xf32, #tpu.memory_space<vmem>>) attributes {dimension_semantics = [#tpu.dimension_semantics<parallel>], iteration_bounds = array<i64: 1>, scalar_prefetch = 0 : i64, scratch_operands = 0 : i64, tpu.core_type = #tpu.core_type<tc>, window_params = [{transform_indices = @transform_0, window_bounds = array<i64: 2, 1024>}, {pipeline_mode = #tpu.pipeline_mode<synchronous>, transform_indices = @transform_1, window_bounds = array<i64: 1, 1024>}, {pipeline_mode = #tpu.pipeline_mode<synchronous>, transform_indices = @transform_2, window_bounds = array<i64: 1, 1024>}, {transform_indices = @transform_3, window_bounds = array<i64: 2, 1024>}]} {
    %c0 = arith.constant 0 : index
    %c0_0 = arith.constant 0 : index
    %0 = vector.load %arg1[%c0, %c0_0] : memref<2x1024xf32, #tpu.memory_space<vmem>>, vector<2x1024xf32>
    %cst = arith.constant dense<0.000000e+00> : vector<2xf32>
    %1 = vector.multi_reduction <add>, %0, %cst [1] : vector<2x1024xf32> to vector<2xf32>
    %2 = vector.shape_cast %1 : vector<2xf32> to vector<2x1xf32>
    %3 = arith.mulf %0, %0 : vector<2x1024xf32>
    %cst_1 = arith.constant dense<0.000000e+00> : vector<2xf32>
    %4 = vector.multi_reduction <add>, %3, %cst_1 [1] : vector<2x1024xf32> to vector<2xf32>
    %5 = vector.shape_cast %4 : vector<2xf32> to vector<2x1xf32>
    %cst_2 = arith.constant 9.765625E-4 : f32
    %6 = vector.broadcast %cst_2 : f32 to vector<2x1xf32>
    %7 = arith.mulf %2, %6 : vector<2x1xf32>
    %cst_3 = arith.constant 1.024000e+03 : f32
    %8 = vector.broadcast %cst_3 : f32 to vector<2x1xf32>
    %9 = arith.mulf %8, %7 : vector<2x1xf32>
    %10 = arith.mulf %9, %7 : vector<2x1xf32>
    %11 = arith.subf %5, %10 : vector<2x1xf32>
    %cst_4 = arith.constant 9.77517105E-4 : f32
    %12 = vector.broadcast %cst_4 : f32 to vector<2x1xf32>
    %13 = arith.mulf %11, %12 : vector<2x1xf32>
    %cst_5 = arith.constant 0.000000e+00 : f32
    %14 = vector.broadcast %cst_5 : f32 to vector<2x1xf32>
    %15 = arith.maximumf %13, %14 : vector<2x1xf32>
    %16 = math.sqrt %15 : vector<2x1xf32>
    %cst_6 = arith.constant 9.99999974E-6 : f32
    %17 = vector.broadcast %cst_6 : f32 to vector<2x1xf32>
    %18 = arith.addf %16, %17 : vector<2x1xf32>
    %19 = tpu.reciprocal %18 : vector<2x1xf32> -> vector<2x1xf32>
    %20 = vector.broadcast %7 : vector<2x1xf32> to vector<2x1024xf32>
    %21 = arith.subf %0, %20 : vector<2x1024xf32>
    %22 = vector.broadcast %19 : vector<2x1xf32> to vector<2x1024xf32>
    %23 = arith.mulf %21, %22 : vector<2x1024xf32>
    %c0_7 = arith.constant 0 : index
    %c0_8 = arith.constant 0 : index
    %24 = vector.load %arg2[%c0_7, %c0_8] : memref<1x1024xf32, #tpu.memory_space<vmem>>, vector<1x1024xf32>
    %25 = vector.broadcast %24 : vector<1x1024xf32> to vector<2x1024xf32>
    %26 = arith.mulf %23, %25 : vector<2x1024xf32>
    %c0_9 = arith.constant 0 : index
    %c0_10 = arith.constant 0 : index
    %27 = vector.load %arg3[%c0_9, %c0_10] : memref<1x1024xf32, #tpu.memory_space<vmem>>, vector<1x1024xf32>
    %28 = vector.broadcast %27 : vector<1x1024xf32> to vector<2x1024xf32>
    %29 = arith.addf %26, %28 : vector<2x1024xf32>
    %c0_11 = arith.constant 0 : index
    %c0_12 = arith.constant 0 : index
    %30 = vector.load %arg4[%c0_11, %c0_12] : memref<2x1024xf32, #tpu.memory_space<vmem>>, vector<2x1024xf32>
    tpu.vector_store %arg4[%c0_11, %c0_12], %29 {strides = array<i32>} : memref<2x1024xf32, #tpu.memory_space<vmem>>, vector<2x1024xf32>,
    return
  }
  func.func @transform_0(%arg0: i32) -> (i32, i32) {
    %c0_i32 = arith.constant 0 : i32
    %c0_i32_0 = arith.constant 0 : i32
    return %arg0, %c0_i32 : i32, i32
  }
  func.func @transform_1(%arg0: i32) -> (i32, i32) {
    %c0_i32 = arith.constant 0 : i32
    %c0_i32_0 = arith.constant 0 : i32
    %c0_i32_1 = arith.constant 0 : i32
    return %c0_i32, %c0_i32_0 : i32, i32
  }
  func.func @transform_2(%arg0: i32) -> (i32, i32) {
    %c0_i32 = arith.constant 0 : i32
    %c0_i32_0 = arith.constant 0 : i32
    %c0_i32_1 = arith.constant 0 : i32
    return %c0_i32, %c0_i32_0 : i32, i32
  }
  func.func @transform_3(%arg0: i32) -> (i32, i32) {
    %c0_i32 = arith.constant 0 : i32
    %c0_i32_0 = arith.constant 0 : i32
    return %arg0, %c0_i32 : i32, i32
  }
}

</mosaic_0001>

<llo_original>
// kernel: tpu_custom_call.1
$region0: #{tpu_custom_call.1}
  #allocation0 [shape = 'u32[]', space=smem, size = 0x4, offset = 0x4, fixed_abs, tag = 'smem constant byte address 0x4 - core index']
  #allocation1 [shape = 'u32[144,128]{1,0:T(1,128)}', space=vmem, size = 0x12000, scoped, tag = 'internal scratch']
  %s0 = inlined_call_operand.hbm [shape: f32[2,1024], index: 0, kind: input, shape index: {}]
  %s1 = inlined_call_operand.hbm [shape: f32[1,1024], index: 1, kind: input, shape index: {}]
  %s2 = inlined_call_operand.hbm [shape: f32[1,1024], index: 2, kind: input, shape index: {}]
  %s3 = inlined_call_operand.hbm [shape: f32[2,1024], index: 3, kind: output, shape index: {}]
  %s4 = sld [smem:[#allocation0]]
  $region34: #{tpu_custom_call.1} parent=0
    _
  %s6 = ssub.s32 1, %s4
  %s7 = scalar_select 0, %s6, %s4
  $region1: #{tpu_custom_call.1} parent=0
    #allocation2 [shape = 'u8[8192]{0}', space=vmem, size = 0x2000, scoped, tag = 'input window, operand 0, single buffered']
    #allocation3 [shape = 's32[1]{0}', space=sflag, size = 0x4, scoped, tag = 'scoped memory for tpu_custom_call.1']
    #allocation4 [shape = 's32[1]{0}', space=sflag, size = 0x4, scoped, tag = 'scoped memory for tpu_custom_call.1']
    #allocation5 [shape = 'u8[4096]{0}', space=vmem, size = 0x1000, scoped, tag = 'input window, operand 1, single buffered']
    #allocation6 [shape = 's32[1]{0}', space=sflag, size = 0x4, scoped, tag = 'scoped memory for tpu_custom_call.1']
    #allocation7 [shape = 'u8[4096]{0}', space=vmem, size = 0x1000, scoped, tag = 'input window, operand 2, single buffered']
    #allocation8 [shape = 'u8[8192]{0}', space=vmem, size = 0x2000, scoped, tag = 'output window, operand 0, single buffered']
    %8 = vsyncpa [#allocation3], 0
    %9 = vsyncpa [#allocation6], 0
    %10 = vsyncpa [#allocation4], 0
    // Predicated region
    $region2: #{tpu_custom_call.1} parent=1 // pred_check
      _
    $region3: #{tpu_custom_call.1} parent=1 // pred_check_branch
      %12 = sbr.rel (0) target = $region5
    $region4: #{tpu_custom_call.1} parent=1 // pred_region
      %s14 = ssub.s32 256, 256
      %15 = vsyncadd [#allocation3], %s14
      %s17 = sshll.u32 [#allocation2], 4
      %s18 = int_to_ptr.vmem [resolvable:$true] %s17
      %20 = dma.hbm_to_vmem [thread:$0]  %s0, 256, %s18, [#allocation3]
    $region5: #{tpu_custom_call.1} parent=1 // pred_fallthru
      _
    // Predicated region
    $region6: #{tpu_custom_call.1} parent=1 // pred_check
      _
    $region7: #{tpu_custom_call.1} parent=1 // pred_check_branch
      %22 = sbr.rel (0) target = $region9
    $region8: #{tpu_custom_call.1} parent=1 // pred_region
      %s24 = ssub.s32 128, 128
      %25 = vsyncadd [#allocation6], %s24
      %s27 = sshll.u32 [#allocation5], 4
      %s28 = int_to_ptr.vmem [resolvable:$true] %s27
      %30 = dma.hbm_to_vmem [thread:$0]  %s1, 128, %s28, [#allocation6]
    $region9: #{tpu_custom_call.1} parent=1 // pred_fallthru
      _
    // Predicated region
    $region10: #{tpu_custom_call.1} parent=1 // pred_check
      _
    $region11: #{tpu_custom_call.1} parent=1 // pred_check_branch
      %32 = sbr.rel (0) target = $region13
    $region12: #{tpu_custom_call.1} parent=1 // pred_region
      %s34 = ssub.s32 128, 128
      %35 = vsyncadd [#allocation6], %s34
      %s37 = sshll.u32 [#allocation7], 4
      %s38 = int_to_ptr.vmem [resolvable:$true] %s37
      %40 = dma.hbm_to_vmem [thread:$0]  %s2, 128, %s38, [#allocation6]
    $region13: #{tpu_custom_call.1} parent=1 // pred_fallthru
      _
    // Predicated region
    $region14: #{tpu_custom_call.1} parent=1 // pred_check
      _
    $region15: #{tpu_custom_call.1} parent=1 // pred_check_branch
      %42 = sbr.rel (0) target = $region17
    $region16: #{tpu_custom_call.1} parent=1 // pred_region
      %43 = dma.done [#allocation3], 256
    $region17: #{tpu_custom_call.1} parent=1 // pred_fallthru
      _
    // Predicated region
    $region18: #{tpu_custom_call.1} parent=1 // pred_check
      _
    $region19: #{tpu_custom_call.1} parent=1 // pred_check_branch
      %45 = sbr.rel (0) target = $region21
    $region20: #{tpu_custom_call.1} parent=1 // pred_region
      %46 = dma.done [#allocation6], 128
    $region21: #{tpu_custom_call.1} parent=1 // pred_fallthru
      _
    // Predicated region
    $region22: #{tpu_custom_call.1} parent=1 // pred_check
      _
    $region23: #{tpu_custom_call.1} parent=1 // pred_check_branch
      %48 = sbr.rel (0) target = $region25
    $region24: #{tpu_custom_call.1} parent=1 // pred_region
      %49 = dma.done [#allocation6], 128
    $region25: #{tpu_custom_call.1} parent=1 // pred_fallthru
      _
    %v50 = vld [vmem:[#allocation2] sm:$0xff]
    %v51 = vld [vmem:[#allocation2 + $0x8] sm:$0xff]
    %v54 = vcombine.high %v50, %v50
    %v56 = vunpack.c.l.s4 1983009808
    %v57 = vunpack.c.0.s8 %v56
    %v58 = vlaneseq
    %v59 = vshrl.u32 %v58, 7
    %v60 = vsub.s32 %v57, %v59
    %v61 = vrot.slane %v50, %v60
    %v63 = vunpack.c.l.s4 1983009808
    %v64 = vunpack.c.0.s8 %v63
    %v65 = vlaneseq
    %v66 = vshrl.u32 %v65, 7
    %v67 = vsub.s32 %v64, %v66
    %v68 = vrot.slane %v54, %v67
    %v69 = vcombine.high %v61, %v61
    %v70 = vcombine.high %v68, %v68
    %v71 = vcombine.high %v51, %v51
    %v73 = vunpack.c.l.s4 1983009808
    %v74 = vunpack.c.0.s8 %v73
    %v75 = vlaneseq
    %v76 = vshrl.u32 %v75, 7
    %v77 = vsub.s32 %v74, %v76
    %v78 = vrot.slane %v51, %v77
    %v80 = vunpack.c.l.s4 1983009808
    %v81 = vunpack.c.0.s8 %v80
    %v82 = vlaneseq
    %v83 = vshrl.u32 %v82, 7
    %v84 = vsub.s32 %v81, %v83
    %v85 = vrot.slane %v71, %v84
    %v86 = vcombine.high %v78, %v78
    %v87 = vcombine.high %v85, %v85
    %vm96 = vcmask 1041408
    %v97 = vsel %vm96, %v61, 0.0
    %v98 = vsel %vm96, %v69, 0.0
    %v99 = vadd.f32 %v97, %v98
    %v100 = vsel %vm96, %v68, 0.0
    %v101 = vadd.f32 %v99, %v100
    %v102 = vsel %vm96, %v70, 0.0
    %v103 = vadd.f32 %v101, %v102
    %v104 = vsel %vm96, %v78, 0.0
    %v105 = vadd.f32 %v103, %v104
    %v106 = vsel %vm96, %v86, 0.0
    %v107 = vadd.f32 %v105, %v106
    %v108 = vsel %vm96, %v85, 0.0
    %v109 = vadd.f32 %v107, %v108
    %v110 = vsel %vm96, %v87, 0.0
    %v111 = vadd.f32 %v109, %v110
    %112 = vadd.xlane.f32.xlu0 %v111
    %v113 = vpop.xlane.xlu0 %112
    %v114 = vmul.f32 %v50, %v50
    %v115 = vmul.f32 %v51, %v51
    %v118 = vcombine.high %v114, %v114
    %v120 = vunpack.c.l.s4 1983009808
    %v121 = vunpack.c.0.s8 %v120
    %v122 = vlaneseq
    %v123 = vshrl.u32 %v122, 7
    %v124 = vsub.s32 %v121, %v123
    %v125 = vrot.slane %v114, %v124
    %v127 = vunpack.c.l.s4 1983009808
    %v128 = vunpack.c.0.s8 %v127
    %v129 = vlaneseq
    %v130 = vshrl.u32 %v129, 7
    %v131 = vsub.s32 %v128, %v130
    %v132 = vrot.slane %v118, %v131
    %v133 = vcombine.high %v125, %v125
    %v134 = vcombine.high %v132, %v132
    %v135 = vcombine.high %v115, %v115
    %v137 = vunpack.c.l.s4 1983009808
    %v138 = vunpack.c.0.s8 %v137
    %v139 = vlaneseq
    %v140 = vshrl.u32 %v139, 7
    %v141 = vsub.s32 %v138, %v140
    %v142 = vrot.slane %v115, %v141
    %v144 = vunpack.c.l.s4 1983009808
    %v145 = vunpack.c.0.s8 %v144
    %v146 = vlaneseq
    %v147 = vshrl.u32 %v146, 7
    %v148 = vsub.s32 %v145, %v147
    %v149 = vrot.slane %v135, %v148
    %v150 = vcombine.high %v142, %v142
    %v151 = vcombine.high %v149, %v149
    %v160 = vsel %vm96, %v125, 0.0
    %v161 = vsel %vm96, %v133, 0.0
    %v162 = vadd.f32 %v160, %v161
    %v163 = vsel %vm96, %v132, 0.0
    %v164 = vadd.f32 %v162, %v163
    %v165 = vsel %vm96, %v134, 0.0
    %v166 = vadd.f32 %v164, %v165
    %v167 = vsel %vm96, %v142, 0.0
    %v168 = vadd.f32 %v166, %v167
    %v169 = vsel %vm96, %v150, 0.0
    %v170 = vadd.f32 %v168, %v169
    %v171 = vsel %vm96, %v149, 0.0
    %v172 = vadd.f32 %v170, %v171
    %v173 = vsel %vm96, %v151, 0.0
    %v174 = vadd.f32 %v172, %v173
    %175 = vadd.xlane.f32.xlu0 %v174
    %v176 = vpop.xlane.xlu0 %175
    %v177 = vmul.f32 %v113, 0.0009765625
    %v178 = vmul.f32 %v177, 1024.0
    %v179 = vmul.f32 %v178, %v177
    %v180 = vsub.f32 %v176, %v179
    %v181 = vmul.f32 %v180, 0.0009775171
    %v182 = vmax.f32 %v181, 0.0
    %v183 = vrsqrt.pop %v182
    %v184 = vmul.f32 %v182, %v183
    %vm185 = vcmp.eq.f32.partialorder %v182, inf
    %v186 = vsel %vm185, %v182, %v184
    %vm187 = vcmp.eq.f32.partialorder %v182, 0.0
    %v188 = vand.u32 %v182, 2147483648
    %v189 = vsel %vm187, %v188, %v186
    %v190 = vadd.f32 %v189, 1e-05
    %v191 = vrcp.pop %v190
    %v194 = vunpack.c.l.s4 269488144
    %v195 = vunpack.c.0.s8 %v194
    %v196 = vlaneseq
    %v197 = vshrl.u32 %v196, 7
    %v198 = vsub.s32 %v195, %v197
    %v199 = vrot.slane %v177, %v198
    %v201 = vsub.f32 %v50, %v199
    %v202 = vsub.f32 %v51, %v199
    %v205 = vunpack.c.l.s4 269488144
    %v206 = vunpack.c.0.s8 %v205
    %v207 = vlaneseq
    %v208 = vshrl.u32 %v207, 7
    %v209 = vsub.s32 %v206, %v208
    %v210 = vrot.slane %v191, %v209
    %v212 = vmul.f32 %v201, %v210
    %v213 = vmul.f32 %v202, %v210
    %v214 = vld [vmem:[#allocation5] sm:$0xff]
    %v216 = vlaneseq
    %v217 = vshrl.u32 %v216, 7
    %v218 = vsub.s32 0, %v217
    %v219 = vrot.slane %v214, %v218
    %v220 = vlaneseq
    %v221 = vshrl.u32 %v220, 7
    %v222 = vsub.s32 1, %v221
    %v223 = vrot.slane %v214, %v222
    %v224 = vlaneseq
    %v225 = vshrl.u32 %v224, 7
    %v226 = vsub.s32 2, %v225
    %v227 = vrot.slane %v214, %v226
    %v228 = vlaneseq
    %v229 = vshrl.u32 %v228, 7
    %v230 = vsub.s32 3, %v229
    %v231 = vrot.slane %v214, %v230
    %v232 = vlaneseq
    %v233 = vshrl.u32 %v232, 7
    %v234 = vsub.s32 4, %v233
    %v235 = vrot.slane %v214, %v234
    %v236 = vlaneseq
    %v237 = vshrl.u32 %v236, 7
    %v238 = vsub.s32 5, %v237
    %v239 = vrot.slane %v214, %v238
    %v240 = vlaneseq
    %v241 = vshrl.u32 %v240, 7
    %v242 = vsub.s32 6, %v241
    %v243 = vrot.slane %v214, %v242
    %v244 = vlaneseq
    %v245 = vshrl.u32 %v244, 7
    %v246 = vsub.s32 7, %v245
    %v247 = vrot.slane %v214, %v246
    %v248 = vcombine.low %v219, %v223
    %v249 = vcombine.low %v227, %v231
    %v251 = vunpack.c.l.s4 1983009808
    %v252 = vunpack.c.0.s8 %v251
    %v253 = vlaneseq
    %v254 = vshrl.u32 %v253, 7
    %v255 = vsub.s32 %v252, %v254
    %v256 = vrot.slane %v248, %v255
    %v258 = vunpack.c.l.s4 1983009808
    %v259 = vunpack.c.0.s8 %v258
    %v260 = vlaneseq
    %v261 = vshrl.u32 %v260, 7
    %v262 = vsub.s32 %v259, %v261
    %v263 = vrot.slane %v249, %v262
    %v264 = vcombine.low %v256, %v263
    %v265 = vcombine.low %v235, %v239
    %v266 = vcombine.low %v243, %v247
    %v268 = vunpack.c.l.s4 1983009808
    %v269 = vunpack.c.0.s8 %v268
    %v270 = vlaneseq
    %v271 = vshrl.u32 %v270, 7
    %v272 = vsub.s32 %v269, %v271
    %v273 = vrot.slane %v265, %v272
    %v275 = vunpack.c.l.s4 1983009808
    %v276 = vunpack.c.0.s8 %v275
    %v277 = vlaneseq
    %v278 = vshrl.u32 %v277, 7
    %v279 = vsub.s32 %v276, %v278
    %v280 = vrot.slane %v266, %v279
    %v281 = vcombine.low %v273, %v280
    %v284 = vmul.f32 %v212, %v264
    %v285 = vmul.f32 %v213, %v281
    %v286 = vld [vmem:[#allocation7] sm:$0xff]
    %v288 = vlaneseq
    %v289 = vshrl.u32 %v288, 7
    %v290 = vsub.s32 0, %v289
    %v291 = vrot.slane %v286, %v290
    %v292 = vlaneseq
    %v293 = vshrl.u32 %v292, 7
    %v294 = vsub.s32 1, %v293
    %v295 = vrot.slane %v286, %v294
    %v296 = vlaneseq
    %v297 = vshrl.u32 %v296, 7
    %v298 = vsub.s32 2, %v297
    %v299 = vrot.slane %v286, %v298
    %v300 = vlaneseq
    %v301 = vshrl.u32 %v300, 7
    %v302 = vsub.s32 3, %v301
    %v303 = vrot.slane %v286, %v302
    %v304 = vlaneseq
    %v305 = vshrl.u32 %v304, 7
    %v306 = vsub.s32 4, %v305
    %v307 = vrot.slane %v286, %v306
    %v308 = vlaneseq
    %v309 = vshrl.u32 %v308, 7
    %v310 = vsub.s32 5, %v309
    %v311 = vrot.slane %v286, %v310
    %v312 = vlaneseq
    %v313 = vshrl.u32 %v312, 7
    %v314 = vsub.s32 6, %v313
    %v315 = vrot.slane %v286, %v314
    %v316 = vlaneseq
    %v317 = vshrl.u32 %v316, 7
    %v318 = vsub.s32 7, %v317
    %v319 = vrot.slane %v286, %v318
    %v320 = vcombine.low %v291, %v295
    %v321 = vcombine.low %v299, %v303
    %v323 = vunpack.c.l.s4 1983009808
    %v324 = vunpack.c.0.s8 %v323
    %v325 = vlaneseq
    %v326 = vshrl.u32 %v325, 7
    %v327 = vsub.s32 %v324, %v326
    %v328 = vrot.slane %v320, %v327
    %v330 = vunpack.c.l.s4 1983009808
    %v331 = vunpack.c.0.s8 %v330
    %v332 = vlaneseq
    %v333 = vshrl.u32 %v332, 7
    %v334 = vsub.s32 %v331, %v333
    %v335 = vrot.slane %v321, %v334
    %v336 = vcombine.low %v328, %v335
    %v337 = vcombine.low %v307, %v311
    %v338 = vcombine.low %v315, %v319
    %v340 = vunpack.c.l.s4 1983009808
    %v341 = vunpack.c.0.s8 %v340
    %v342 = vlaneseq
    %v343 = vshrl.u32 %v342, 7
    %v344 = vsub.s32 %v341, %v343
    %v345 = vrot.slane %v337, %v344
    %v347 = vunpack.c.l.s4 1983009808
    %v348 = vunpack.c.0.s8 %v347
    %v349 = vlaneseq
    %v350 = vshrl.u32 %v349, 7
    %v351 = vsub.s32 %v348, %v350
    %v352 = vrot.slane %v338, %v351
    %v353 = vcombine.low %v345, %v352
    %v356 = vadd.f32 %v284, %v336
    %v357 = vadd.f32 %v285, %v353
    %358 = vst [vmem:[#allocation8] sm:$0xff] %v356
    %359 = vst [vmem:[#allocation8 + $0x8] sm:$0xff] %v357
    // Predicated region
    $region26: #{tpu_custom_call.1} parent=1 // pred_check
      _
    $region27: #{tpu_custom_call.1} parent=1 // pred_check_branch
      %361 = sbr.rel (0) target = $region29
    $region28: #{tpu_custom_call.1} parent=1 // pred_region
      %s363 = ssub.s32 256, 256
      %364 = vsyncadd [#allocation4], %s363
      %s366 = sshll.u32 [#allocation8], 4
      %s367 = int_to_ptr.vmem [resolvable:$true] %s366
      %369 = dma.vmem_to_hbm [thread:$0]  %s367, 256, %s3, [#allocation4]
    $region29: #{tpu_custom_call.1} parent=1 // pred_fallthru
      _
    // Predicated region
    $region30: #{tpu_custom_call.1} parent=1 // pred_check
      _
    $region31: #{tpu_custom_call.1} parent=1 // pred_check_branch
      %371 = sbr.rel (0) target = $region33
    $region32: #{tpu_custom_call.1} parent=1 // pred_region
      %372 = dma.done [#allocation4], 256
    $region33: #{tpu_custom_call.1} parent=1 // pred_fallthru
      _
    %373 = vsyncpa [#allocation3], 1
    %374 = vsyncpa [#allocation6], 1
    %375 = vsyncpa [#allocation4], 1

</llo_original>
